<compile_context>
chip_gen: v7x
topology: tpu7x:2x2x1
jax: 0.10.0
libtpu: 0.0.40
codegen_flags: <defaults>
</compile_context>

<pallas_src>
import jax
import jax.numpy as jnp
import numpy as np
from jax.experimental import pallas as pl
from jax.experimental.pallas import tpu as pltpu


def _make_prenet_kernel(num_layers: int):
    def kernel(*refs):
        # refs = (x, w_0, b_0, w_1, b_1, ..., w_{L-1}, b_{L-1}, out)
        h = refs[0][...]                                   # (B, in_features)
        for l in range(num_layers):                        # statically unrolled
            w = refs[1 + 2 * l][...]                       # (d_in, d_out)
            b = refs[2 + 2 * l][...]                       # (1, d_out) broadcasts over B
            h = jnp.maximum(
                jnp.dot(h, w, preferred_element_type=jnp.float32) + b, 0.0)
        refs[-1][...] = h.astype(refs[-1].dtype)
    return kernel


def prenet(x, weights, biases):
    """Pallas Prenet forward.

    x       : (B, in_features) float32
    weights : list of (d_in, d_out) float32 arrays (== torch linear.weight.T)
    biases  : list of (1, d_out)  float32 arrays (== torch linear.bias[None, :])
    returns : (B, out_features[-1]) float32
    """
    assert len(weights) == len(biases)
    num_layers = len(weights)
    B = x.shape[0]
    out_dim = weights[-1].shape[1]

    kernel = _make_prenet_kernel(num_layers)
    vmem = pl.BlockSpec(memory_space=pltpu.MemorySpace.VMEM)  # whole-array, VMEM-resident

    args = [x]
    for w, b in zip(weights, biases):
        args.append(w)
        args.append(b)

    return pl.pallas_call(
        kernel,
        out_shape=jax.ShapeDtypeStruct((B, out_dim), jnp.float32),
        in_specs=[vmem] * len(args),
        out_specs=vmem,
    )(*args)


def prenet_ref(x, weights, biases):
    """Pure-JAX reference matching the PyTorch forward (eval mode, dropout identity)."""
    h = x
    for w, b in zip(weights, biases):
        h = jnp.maximum(h @ w + b, 0.0)
    return h


if __name__ == "__main__":
    B = 8                     # batch
    in_features = 80          # e.g. mel channels feeding the prenet
    out_features = [256, 256] # module default: two prenet blocks

    key = jax.random.PRNGKey(0)
    keys = jax.random.split(key, 1 + 2 * len(out_features))
    kx, kws = keys[0], keys[1:]

    x = jax.random.normal(kx, (B, in_features), dtype=jnp.float32)

    dims = [in_features] + out_features
    weights, biases = [], []
    for l, (din, dout) in enumerate(zip(dims[:-1], dims[1:])):
        scale = 1.0 / np.sqrt(din)  # torch nn.Linear init: U(-1/sqrt(in), 1/sqrt(in))
        w = jax.random.uniform(kws[2 * l], (din, dout), jnp.float32, -scale, scale)
        b = jax.random.uniform(kws[2 * l + 1], (1, dout), jnp.float32, -scale, scale)
        weights.append(w)
        biases.append(b)

    out = jax.block_until_ready(prenet(x, weights, biases))
    ref = prenet_ref(x, weights, biases)

    np.testing.assert_allclose(np.asarray(out), np.asarray(ref), rtol=1e-5, atol=1e-5)
    print("KERNEL_OK")
</pallas_src>

<mosaic_0001>
module attributes {stable_mosaic.version = 11 : i64} {
  func.func @kernel(%arg0: memref<8x80xf32, #tpu.memory_space<vmem>>, %arg1: memref<80x256xf32, #tpu.memory_space<vmem>>, %arg2: memref<1x256xf32, #tpu.memory_space<vmem>>, %arg3: memref<256x256xf32, #tpu.memory_space<vmem>>, %arg4: memref<1x256xf32, #tpu.memory_space<vmem>>, %arg5: memref<8x256xf32, #tpu.memory_space<vmem>>) attributes {dimension_semantics = [], scalar_prefetch = 0 : i64, scratch_operands = 0 : i64, tpu.core_type = #tpu.core_type<tc>} {
    %c0 = arith.constant 0 : index
    %c0_0 = arith.constant 0 : index
    %0 = vector.load %arg0[%c0, %c0_0] : memref<8x80xf32, #tpu.memory_space<vmem>>, vector<8x80xf32>
    %c0_1 = arith.constant 0 : index
    %c0_2 = arith.constant 0 : index
    %1 = vector.load %arg1[%c0_1, %c0_2] : memref<80x256xf32, #tpu.memory_space<vmem>>, vector<80x256xf32>
    %c0_3 = arith.constant 0 : index
    %c0_4 = arith.constant 0 : index
    %2 = vector.load %arg2[%c0_3, %c0_4] : memref<1x256xf32, #tpu.memory_space<vmem>>, vector<1x256xf32>
    %cst = arith.constant dense<0.000000e+00> : vector<8x256xf32>
    %3 = tpu.matmul %0, %1, %cst {dimension_numbers = #tpu.dot_dimension_numbers<[1], [0], [0], [1], [0, 0, 1, 1], [], []>} : vector<8x80xf32>, vector<80x256xf32>, vector<8x256xf32> -> vector<8x256xf32>
    %4 = vector.broadcast %2 : vector<1x256xf32> to vector<8x256xf32>
    %5 = arith.addf %3, %4 : vector<8x256xf32>
    %cst_5 = arith.constant 0.000000e+00 : f32
    %6 = vector.broadcast %cst_5 : f32 to vector<8x256xf32>
    %7 = arith.maximumf %5, %6 : vector<8x256xf32>
    %c0_6 = arith.constant 0 : index
    %c0_7 = arith.constant 0 : index
    %8 = vector.load %arg3[%c0_6, %c0_7] : memref<256x256xf32, #tpu.memory_space<vmem>>, vector<256x256xf32>
    %c0_8 = arith.constant 0 : index
    %c0_9 = arith.constant 0 : index
    %9 = vector.load %arg4[%c0_8, %c0_9] : memref<1x256xf32, #tpu.memory_space<vmem>>, vector<1x256xf32>
    %cst_10 = arith.constant dense<0.000000e+00> : vector<8x256xf32>
    %10 = tpu.matmul %7, %8, %cst_10 {dimension_numbers = #tpu.dot_dimension_numbers<[1], [0], [0], [1], [0, 0, 1, 1], [], []>} : vector<8x256xf32>, vector<256x256xf32>, vector<8x256xf32> -> vector<8x256xf32>
    %11 = vector.broadcast %9 : vector<1x256xf32> to vector<8x256xf32>
    %12 = arith.addf %10, %11 : vector<8x256xf32>
    %cst_11 = arith.constant 0.000000e+00 : f32
    %13 = vector.broadcast %cst_11 : f32 to vector<8x256xf32>
    %14 = arith.maximumf %12, %13 : vector<8x256xf32>
    %c0_12 = arith.constant 0 : index
    %c0_13 = arith.constant 0 : index
    %15 = vector.load %arg5[%c0_12, %c0_13] : memref<8x256xf32, #tpu.memory_space<vmem>>, vector<8x256xf32>
    tpu.vector_store %arg5[%c0_12, %c0_13], %14 {strides = array<i32>} : memref<8x256xf32, #tpu.memory_space<vmem>>, vector<8x256xf32>,
    return
  }
}

</mosaic_0001>

<llo_original>
// kernel: tpu_custom_call.1
$region0: #{tpu_custom_call.1}
  #allocation0 [shape = 'u32[]', space=smem, size = 0x4, offset = 0x4, fixed_abs, tag = 'smem constant byte address 0x4 - core index']
  #allocation1 [shape = 'u32[144,128]{1,0:T(1,128)}', space=vmem, size = 0x12000, scoped, tag = 'internal scratch']
  %s0 = inlined_call_operand.hbm [shape: f32[8,80], index: 0, kind: input, shape index: {}]
  %s1 = inlined_call_operand.hbm [shape: f32[80,256], index: 1, kind: input, shape index: {}]
  %s2 = inlined_call_operand.vmem [shape: f32[1,256], index: 2, kind: input, shape index: {}]
  %s3 = inlined_call_operand.hbm [shape: f32[256,256], index: 3, kind: input, shape index: {}]
  %s4 = inlined_call_operand.vmem [shape: f32[1,256], index: 4, kind: input, shape index: {}]
  %s5 = inlined_call_operand.hbm [shape: f32[8,256], index: 5, kind: output, shape index: {}]
  %s6 = sld [smem:[#allocation0]]
  $region42: #{tpu_custom_call.1} parent=0
    _
  %s8 = ssub.s32 1, %s6
  %s9 = scalar_select 0, %s8, %s6
  $region1: #{tpu_custom_call.1} parent=0
    #allocation2 [shape = 'u8[4096]{0}', space=vmem, size = 0x1000, scoped, tag = 'input window, operand 0, single buffered']
    #allocation3 [shape = 's32[1]{0}', space=sflag, size = 0x4, scoped, tag = 'scoped memory for tpu_custom_call.1']
    #allocation4 [shape = 's32[1]{0}', space=sflag, size = 0x4, scoped, tag = 'scoped memory for tpu_custom_call.1']
    #allocation5 [shape = 'u8[81920]{0}', space=vmem, size = 0x14000, scoped, tag = 'input window, operand 1, single buffered']
    #allocation6 [shape = 's32[1]{0}', space=sflag, size = 0x4, scoped, tag = 'scoped memory for tpu_custom_call.1']
    #allocation7 [shape = 'u8[262144]{0}', space=vmem, size = 0x40000, scoped, tag = 'input window, operand 3, single buffered']
    #allocation8 [shape = 'u8[8192]{0}', space=vmem, size = 0x2000, scoped, tag = 'output window, operand 0, single buffered']
    %10 = vsyncpa [#allocation3], 0
    %11 = vsyncpa [#allocation6], 0
    %12 = vsyncpa [#allocation4], 0
    // Predicated region
    $region2: #{tpu_custom_call.1} parent=1 // pred_check
      _
    $region3: #{tpu_custom_call.1} parent=1 // pred_check_branch
      %14 = sbr.rel (0) target = $region5
    $region4: #{tpu_custom_call.1} parent=1 // pred_region
      %s16 = ssub.s32 128, 128
      %17 = vsyncadd [#allocation3], %s16
      %s19 = sshll.u32 [#allocation2], 4
      %s20 = int_to_ptr.vmem [resolvable:$true] %s19
      %22 = dma.hbm_to_vmem [thread:$0]  %s0, 128, %s20, [#allocation3]
    $region5: #{tpu_custom_call.1} parent=1 // pred_fallthru
      _
    // Predicated region
    $region6: #{tpu_custom_call.1} parent=1 // pred_check
      _
    $region7: #{tpu_custom_call.1} parent=1 // pred_check_branch
      %24 = sbr.rel (0) target = $region9
    $region8: #{tpu_custom_call.1} parent=1 // pred_region
      %s26 = ssub.s32 2560, 2560
      %27 = vsyncadd [#allocation6], %s26
      %s28 = sshll.u32 [#allocation5], 4
      %s29 = int_to_ptr.vmem [resolvable:$true] %s28
      %34 = dma.hbm_to_vmem [thread:$0]  %s1, 2560, %s29, [#allocation6], 256, 256, 16
    $region9: #{tpu_custom_call.1} parent=1 // pred_fallthru
      _
    // Predicated region
    $region10: #{tpu_custom_call.1} parent=1 // pred_check
      _
    $region11: #{tpu_custom_call.1} parent=1 // pred_check_branch
      %36 = sbr.rel (0) target = $region13
    $region12: #{tpu_custom_call.1} parent=1 // pred_region
      _
    $region13: #{tpu_custom_call.1} parent=1 // pred_fallthru
      _
    // Predicated region
    $region14: #{tpu_custom_call.1} parent=1 // pred_check
      _
    $region15: #{tpu_custom_call.1} parent=1 // pred_check_branch
      %38 = sbr.rel (0) target = $region17
    $region16: #{tpu_custom_call.1} parent=1 // pred_region
      %s40 = ssub.s32 8192, 8192
      %41 = vsyncadd [#allocation6], %s40
      %s42 = sshll.u32 [#allocation7], 4
      %s43 = int_to_ptr.vmem [resolvable:$true] %s42
      %48 = dma.hbm_to_vmem [thread:$0]  %s3, 8192, %s43, [#allocation6], 256, 256, 16
    $region17: #{tpu_custom_call.1} parent=1 // pred_fallthru
      _
    // Predicated region
    $region18: #{tpu_custom_call.1} parent=1 // pred_check
      _
    $region19: #{tpu_custom_call.1} parent=1 // pred_check_branch
      %50 = sbr.rel (0) target = $region21
    $region20: #{tpu_custom_call.1} parent=1 // pred_region
      _
    $region21: #{tpu_custom_call.1} parent=1 // pred_fallthru
      _
    // Predicated region
    $region22: #{tpu_custom_call.1} parent=1 // pred_check
      _
    $region23: #{tpu_custom_call.1} parent=1 // pred_check_branch
      %52 = sbr.rel (0) target = $region25
    $region24: #{tpu_custom_call.1} parent=1 // pred_region
      %53 = dma.done [#allocation3], 128
    $region25: #{tpu_custom_call.1} parent=1 // pred_fallthru
      _
    // Predicated region
    $region26: #{tpu_custom_call.1} parent=1 // pred_check
      _
    $region27: #{tpu_custom_call.1} parent=1 // pred_check_branch
      %55 = sbr.rel (0) target = $region29
    $region28: #{tpu_custom_call.1} parent=1 // pred_region
      %56 = dma.done [#allocation6], 2560
    $region29: #{tpu_custom_call.1} parent=1 // pred_fallthru
      _
    // Predicated region
    $region30: #{tpu_custom_call.1} parent=1 // pred_check
      _
    $region31: #{tpu_custom_call.1} parent=1 // pred_check_branch
      %58 = sbr.rel (0) target = $region33
    $region32: #{tpu_custom_call.1} parent=1 // pred_region
      %59 = dma.done [#allocation6], 8192
    $region33: #{tpu_custom_call.1} parent=1 // pred_fallthru
      _
    %v60 = vld [vmem:[#allocation2] sm:$0xff]
    %v61 = vld [vmem:[#allocation5] sm:$0xff]
    %v62 = vld [vmem:[#allocation5 + $0x8] sm:$0xff]
    %v63 = vld [vmem:[#allocation5 + $0x10] sm:$0xff]
    %v64 = vld [vmem:[#allocation5 + $0x18] sm:$0xff]
    %v65 = vld [vmem:[#allocation5 + $0x20] sm:$0xff]
    %v66 = vld [vmem:[#allocation5 + $0x28] sm:$0xff]
    %v67 = vld [vmem:[#allocation5 + $0x30] sm:$0xff]
    %v68 = vld [vmem:[#allocation5 + $0x38] sm:$0xff]
    %v69 = vld [vmem:[#allocation5 + $0x40] sm:$0xff]
    %v70 = vld [vmem:[#allocation5 + $0x48] sm:$0xff]
    %v71 = vld [vmem:[#allocation5 + $0x50] sm:$0xff]
    %v72 = vld [vmem:[#allocation5 + $0x58] sm:$0xff]
    %v73 = vld [vmem:[#allocation5 + $0x60] sm:$0xff]
    %v74 = vld [vmem:[#allocation5 + $0x68] sm:$0xff]
    %v75 = vld [vmem:[#allocation5 + $0x70] sm:$0xff]
    %v76 = vld [vmem:[#allocation5 + $0x78] sm:$0xff]
    %v77 = vld [vmem:[#allocation5 + $0x80] sm:$0xff]
    %v78 = vld [vmem:[#allocation5 + $0x88] sm:$0xff]
    %v79 = vld [vmem:[#allocation5 + $0x90] sm:$0xff]
    %v80 = vld [vmem:[#allocation5 + $0x98] sm:$0xff]
    %v81 = vld [vmem:[%s2] sm:$0x3]
    %v83 = vlaneseq
    %v84 = vshrl.u32 %v83, 7
    %v85 = vsub.s32 0, %v84
    %v86 = vrot.slane %v81, %v85
    %v87 = vlaneseq
    %v88 = vshrl.u32 %v87, 7
    %v89 = vsub.s32 1, %v88
    %v90 = vrot.slane %v81, %v89
    %vm93 = vcmask 654336
    %v95 = vsel %vm93, %v60, 0
    %97 = vmatprep.subr.mxu0 %v62
    %98 = vmatpush1.msra.mxu0 %v61
    %99 = vmatprep.subr.mxu0 %v64
    %100 = vmatpush1.msra.mxu0 %v63
    %101 = vmatprep.subr.mxu0 %v66
    %102 = vmatpush1.msra.mxu0 %v65
    %103 = vmatprep.subr.mxu0 %v68
    %104 = vmatpush1.msra.mxu0 %v67
    %105 = vmatprep.subr.mxu0 %v70
    %106 = vmatpush1.msra.mxu0 %v69
    %107 = vmatprep.subr.mxu0 %v72
    %108 = vmatpush1.msra.mxu0 %v71
    %109 = vmatprep.subr.mxu0 %v74
    %110 = vmatpush1.msra.mxu0 %v73
    %111 = vmatprep.subr.mxu0 %v76
    %112 = vmatpush1.msra.mxu0 %v75
    %113 = vmatprep.subr.mxu0 %v78
    %114 = vmatpush1.msra.mxu0 %v77
    %115 = vmatprep.subr.mxu0 %v80
    %116 = vmatpush1.msra.mxu0 %v79
    %117 = vmatprep.subr.mxu0 0.0
    %118 = vmatpush1.msra.mxu0 0.0
    %119 = vmatprep.subr.mxu0 0.0
    %120 = vmatpush1.msra.mxu0 0.0
    %121 = vmatprep.subr.mxu0 0.0
    %122 = vmatpush1.msra.mxu0 0.0
    %123 = vmatprep.subr.mxu0 0.0
    %124 = vmatpush1.msra.mxu0 0.0
    %125 = vmatprep.subr.mxu0 0.0
    %126 = vmatpush1.msra.mxu0 0.0
    %127 = vmatprep.subr.mxu0 0.0
    %128 = vmatpush1.msra.mxu0 0.0
    %129 = vmatprep.subr.mxu0 0.0
    %130 = vmatpush1.msra.mxu0 0.0
    %131 = vmatprep.subr.mxu0 0.0
    %132 = vmatpush1.msra.mxu0 0.0
    %133 = vmatprep.subr.mxu0 0.0
    %134 = vmatpush1.msra.mxu0 0.0
    %135 = vmatprep.subr.mxu0 0.0
    %136 = vmatpush1.msra.mxu0 0.0
    %137 = vmatprep.subr.mxu0 0.0
    %138 = vmatpush1.msra.mxu0 0.0
    %139 = vmatprep.subr.mxu0 0.0
    %140 = vmatpush1.msra.mxu0 0.0
    %141 = vmatprep.subr.mxu0 0.0
    %142 = vmatpush1.msra.mxu0 0.0
    %143 = vmatprep.subr.mxu0 0.0
    %144 = vmatpush1.msra.mxu0 0.0
    %145 = vmatprep.subr.mxu0 0.0
    %146 = vmatpush1.msra.mxu0 0.0
    %147 = vmatprep.subr.mxu0 0.0
    %148 = vmatpush1.msra.mxu0 0.0
    %149 = vmatprep.subr.mxu0 0.0
    %150 = vmatpush1.msra.mxu0 0.0
    %151 = vmatprep.subr.mxu0 0.0
    %152 = vmatpush1.msra.mxu0 0.0
    %153 = vmatprep.subr.mxu0 0.0
    %154 = vmatpush1.msra.mxu0 0.0
    %155 = vmatprep.subr.mxu0 0.0
    %156 = vmatpush1.msra.mxu0 0.0
    %157 = vmatprep.subr.mxu0 0.0
    %158 = vmatpush1.msra.mxu0 0.0
    %159 = vmatprep.subr.mxu0 0.0
    %160 = vmatpush1.msra.mxu0 0.0
    %161 = vmatprep.mubr.f32.mxu0 0.0
    %162 = vmatmul.mubr.f32.gmra.mrb[0].mxu0 %v95
    %v163 = vpop.f32.mrb[0].mxu0
    %v164 = vadd.f32 %v86, %v163
    %v165 = vpop.f32.mrb[0].mxu0
    %v166 = vadd.f32 %v90, %v165
    %167 = vdwg.mxu0
    %v168 = vmax.f32 %v164, 0.0
    %v169 = vmax.f32 %v166, 0.0
    %v170 = vld [vmem:[#allocation7] sm:$0xff]
    %v171 = vld [vmem:[#allocation7 + $0x8] sm:$0xff]
    %v172 = vld [vmem:[#allocation7 + $0x10] sm:$0xff]
    %v173 = vld [vmem:[#allocation7 + $0x18] sm:$0xff]
    %v174 = vld [vmem:[#allocation7 + $0x20] sm:$0xff]
    %v175 = vld [vmem:[#allocation7 + $0x28] sm:$0xff]
    %v176 = vld [vmem:[#allocation7 + $0x30] sm:$0xff]
    %v177 = vld [vmem:[#allocation7 + $0x38] sm:$0xff]
    %v178 = vld [vmem:[#allocation7 + $0x40] sm:$0xff]
    %v179 = vld [vmem:[#allocation7 + $0x48] sm:$0xff]
    %v180 = vld [vmem:[#allocation7 + $0x50] sm:$0xff]
    %v181 = vld [vmem:[#allocation7 + $0x58] sm:$0xff]
    %v182 = vld [vmem:[#allocation7 + $0x60] sm:$0xff]
    %v183 = vld [vmem:[#allocation7 + $0x68] sm:$0xff]
    %v184 = vld [vmem:[#allocation7 + $0x70] sm:$0xff]
    %v185 = vld [vmem:[#allocation7 + $0x78] sm:$0xff]
    %v186 = vld [vmem:[#allocation7 + $0x80] sm:$0xff]
    %v187 = vld [vmem:[#allocation7 + $0x88] sm:$0xff]
    %v188 = vld [vmem:[#allocation7 + $0x90] sm:$0xff]
    %v189 = vld [vmem:[#allocation7 + $0x98] sm:$0xff]
    %v190 = vld [vmem:[#allocation7 + $0xa0] sm:$0xff]
    %v191 = vld [vmem:[#allocation7 + $0xa8] sm:$0xff]
    %v192 = vld [vmem:[#allocation7 + $0xb0] sm:$0xff]
    %v193 = vld [vmem:[#allocation7 + $0xb8] sm:$0xff]
    %v194 = vld [vmem:[#allocation7 + $0xc0] sm:$0xff]
    %v195 = vld [vmem:[#allocation7 + $0xc8] sm:$0xff]
    %v196 = vld [vmem:[#allocation7 + $0xd0] sm:$0xff]
    %v197 = vld [vmem:[#allocation7 + $0xd8] sm:$0xff]
    %v198 = vld [vmem:[#allocation7 + $0xe0] sm:$0xff]
    %v199 = vld [vmem:[#allocation7 + $0xe8] sm:$0xff]
    %v200 = vld [vmem:[#allocation7 + $0xf0] sm:$0xff]
    %v201 = vld [vmem:[#allocation7 + $0xf8] sm:$0xff]
    %v202 = vld [vmem:[#allocation7 + $0x100] sm:$0xff]
    %v203 = vld [vmem:[#allocation7 + $0x108] sm:$0xff]
    %v204 = vld [vmem:[#allocation7 + $0x110] sm:$0xff]
    %v205 = vld [vmem:[#allocation7 + $0x118] sm:$0xff]
    %v206 = vld [vmem:[#allocation7 + $0x120] sm:$0xff]
    %v207 = vld [vmem:[#allocation7 + $0x128] sm:$0xff]
    %v208 = vld [vmem:[#allocation7 + $0x130] sm:$0xff]
    %v209 = vld [vmem:[#allocation7 + $0x138] sm:$0xff]
    %v210 = vld [vmem:[#allocation7 + $0x140] sm:$0xff]
    %v211 = vld [vmem:[#allocation7 + $0x148] sm:$0xff]
    %v212 = vld [vmem:[#allocation7 + $0x150] sm:$0xff]
    %v213 = vld [vmem:[#allocation7 + $0x158] sm:$0xff]
    %v214 = vld [vmem:[#allocation7 + $0x160] sm:$0xff]
    %v215 = vld [vmem:[#allocation7 + $0x168] sm:$0xff]
    %v216 = vld [vmem:[#allocation7 + $0x170] sm:$0xff]
    %v217 = vld [vmem:[#allocation7 + $0x178] sm:$0xff]
    %v218 = vld [vmem:[#allocation7 + $0x180] sm:$0xff]
    %v219 = vld [vmem:[#allocation7 + $0x188] sm:$0xff]
    %v220 = vld [vmem:[#allocation7 + $0x190] sm:$0xff]
    %v221 = vld [vmem:[#allocation7 + $0x198] sm:$0xff]
    %v222 = vld [vmem:[#allocation7 + $0x1a0] sm:$0xff]
    %v223 = vld [vmem:[#allocation7 + $0x1a8] sm:$0xff]
    %v224 = vld [vmem:[#allocation7 + $0x1b0] sm:$0xff]
    %v225 = vld [vmem:[#allocation7 + $0x1b8] sm:$0xff]
    %v226 = vld [vmem:[#allocation7 + $0x1c0] sm:$0xff]
    %v227 = vld [vmem:[#allocation7 + $0x1c8] sm:$0xff]
    %v228 = vld [vmem:[#allocation7 + $0x1d0] sm:$0xff]
    %v229 = vld [vmem:[#allocation7 + $0x1d8] sm:$0xff]
    %v230 = vld [vmem:[#allocation7 + $0x1e0] sm:$0xff]
    %v231 = vld [vmem:[#allocation7 + $0x1e8] sm:$0xff]
    %v232 = vld [vmem:[#allocation7 + $0x1f0] sm:$0xff]
    %v233 = vld [vmem:[#allocation7 + $0x1f8] sm:$0xff]
    %v234 = vld [vmem:[%s4] sm:$0x3]
    %v236 = vlaneseq
    %v237 = vshrl.u32 %v236, 7
    %v238 = vsub.s32 0, %v237
    %v239 = vrot.slane %v234, %v238
    %v240 = vlaneseq
    %v241 = vshrl.u32 %v240, 7
    %v242 = vsub.s32 1, %v241
    %v243 = vrot.slane %v234, %v242
    %246 = vmatprep.subr.mxu0 %v171
    %247 = vmatpush1.msra.mxu0 %v170
    %248 = vmatprep.subr.mxu0 %v173
    %249 = vmatpush1.msra.mxu0 %v172
    %250 = vmatprep.subr.mxu0 %v175
    %251 = vmatpush1.msra.mxu0 %v174
    %252 = vmatprep.subr.mxu0 %v177
    %253 = vmatpush1.msra.mxu0 %v176
    %254 = vmatprep.subr.mxu0 %v179
    %255 = vmatpush1.msra.mxu0 %v178
    %256 = vmatprep.subr.mxu0 %v181
    %257 = vmatpush1.msra.mxu0 %v180
    %258 = vmatprep.subr.mxu0 %v183
    %259 = vmatpush1.msra.mxu0 %v182
    %260 = vmatprep.subr.mxu0 %v185
    %261 = vmatpush1.msra.mxu0 %v184
    %262 = vmatprep.subr.mxu0 %v187
    %263 = vmatpush1.msra.mxu0 %v186
    %264 = vmatprep.subr.mxu0 %v189
    %265 = vmatpush1.msra.mxu0 %v188
    %266 = vmatprep.subr.mxu0 %v191
    %267 = vmatpush1.msra.mxu0 %v190
    %268 = vmatprep.subr.mxu0 %v193
    %269 = vmatpush1.msra.mxu0 %v192
    %270 = vmatprep.subr.mxu0 %v195
    %271 = vmatpush1.msra.mxu0 %v194
    %272 = vmatprep.subr.mxu0 %v197
    %273 = vmatpush1.msra.mxu0 %v196
    %274 = vmatprep.subr.mxu0 %v199
    %275 = vmatpush1.msra.mxu0 %v198
    %276 = vmatprep.subr.mxu0 %v201
    %277 = vmatpush1.msra.mxu0 %v200
    %278 = vmatprep.subr.mxu0 %v203
    %279 = vmatpush1.msra.mxu0 %v202
    %280 = vmatprep.subr.mxu0 %v205
    %281 = vmatpush1.msra.mxu0 %v204
    %282 = vmatprep.subr.mxu0 %v207
    %283 = vmatpush1.msra.mxu0 %v206
    %284 = vmatprep.subr.mxu0 %v209
    %285 = vmatpush1.msra.mxu0 %v208
    %286 = vmatprep.subr.mxu0 %v211
    %287 = vmatpush1.msra.mxu0 %v210
    %288 = vmatprep.subr.mxu0 %v213
    %289 = vmatpush1.msra.mxu0 %v212
    %290 = vmatprep.subr.mxu0 %v215
    %291 = vmatpush1.msra.mxu0 %v214
    %292 = vmatprep.subr.mxu0 %v217
    %293 = vmatpush1.msra.mxu0 %v216
    %294 = vmatprep.subr.mxu0 %v219
    %295 = vmatpush1.msra.mxu0 %v218
    %296 = vmatprep.subr.mxu0 %v221
    %297 = vmatpush1.msra.mxu0 %v220
    %298 = vmatprep.subr.mxu0 %v223
    %299 = vmatpush1.msra.mxu0 %v222
    %300 = vmatprep.subr.mxu0 %v225
    %301 = vmatpush1.msra.mxu0 %v224
    %302 = vmatprep.subr.mxu0 %v227
    %303 = vmatpush1.msra.mxu0 %v226
    %304 = vmatprep.subr.mxu0 %v229
    %305 = vmatpush1.msra.mxu0 %v228
    %306 = vmatprep.subr.mxu0 %v231
    %307 = vmatpush1.msra.mxu0 %v230
    %308 = vmatprep.subr.mxu0 %v233
    %309 = vmatpush1.msra.mxu0 %v232
    %310 = vmatprep.mubr.f32.mxu0 %v169
    %311 = vmatmul.mubr.f32.gmra.mrb[0].mxu0 %v168
    %v312 = vpop.f32.mrb[0].mxu0
    %v313 = vadd.f32 %v239, %v312
    %v314 = vpop.f32.mrb[0].mxu0
    %v315 = vadd.f32 %v243, %v314
    %316 = vdwg.mxu0
    %v317 = vmax.f32 %v313, 0.0
    %v318 = vmax.f32 %v315, 0.0
    %319 = vst [vmem:[#allocation8] sm:$0xff] %v317
    %320 = vst [vmem:[#allocation8 + $0x8] sm:$0xff] %v318
    // Predicated region
    $region34: #{tpu_custom_call.1} parent=1 // pred_check
      _
    $region35: #{tpu_custom_call.1} parent=1 // pred_check_branch
      %322 = sbr.rel (0) target = $region37
    $region36: #{tpu_custom_call.1} parent=1 // pred_region
      %s324 = ssub.s32 256, 256
      %325 = vsyncadd [#allocation4], %s324
      %s327 = sshll.u32 [#allocation8], 4
      %s328 = int_to_ptr.vmem [resolvable:$true] %s327
      %330 = dma.vmem_to_hbm [thread:$0]  %s328, 256, %s5, [#allocation4]
    $region37: #{tpu_custom_call.1} parent=1 // pred_fallthru
      _
    // Predicated region
    $region38: #{tpu_custom_call.1} parent=1 // pred_check
      _
    $region39: #{tpu_custom_call.1} parent=1 // pred_check_branch
      %332 = sbr.rel (0) target = $region41
    $region40: #{tpu_custom_call.1} parent=1 // pred_region
      %333 = dma.done [#allocation4], 256
    $region41: #{tpu_custom_call.1} parent=1 // pred_fallthru
      _
    %334 = vsyncpa [#allocation3], 1
    %335 = vsyncpa [#allocation6], 1
    %336 = vsyncpa [#allocation4], 1

</llo_original>
